<compile_context>
chip_gen: v5e
topology: v5e:2x2
jax: 0.10.0
libtpu: 0.0.40
codegen_flags: <defaults>
</compile_context>

<pallas_src>
import jax
import jax.numpy as jnp
from jax.experimental import pallas as pl
from jax.experimental.pallas import tpu as pltpu


def mean_pool_kernel(h_ref, m_ref, o_ref, sum_mask_ref):
    # h_ref: (TB, TS, H) input dtype; m_ref: (TB, TS, 1); o_ref: (TB, H) f32.
    # o_ref doubles as the sum_embeddings accumulator (resident across k).
    k = pl.program_id(1)

    @pl.when(k == 0)
    def _init():
        o_ref[...] = jnp.zeros_like(o_ref)
        sum_mask_ref[...] = jnp.zeros_like(sum_mask_ref)

    h = h_ref[...]                                  # (TB, TS, H) input dtype
    m = m_ref[...]                                  # (TB, TS, 1)
    # 0/1 mask -> product is exact in the input dtype; upcast only for the
    # f32 accumulation (keeps bf16 narrow through the multiply).
    prod = (h * m.astype(h.dtype)).astype(jnp.float32)
    o_ref[...] += jnp.sum(prod, axis=1)             # (TB, H)
    sum_mask_ref[...] += jnp.sum(m.astype(jnp.float32), axis=1)   # (TB, 1)

    @pl.when(k == pl.num_programs(1) - 1)
    def _finalize():
        denom = jnp.maximum(sum_mask_ref[...], 1e-9)     # torch.clamp(min=1e-9)
        o_ref[...] = o_ref[...] * pl.reciprocal(denom)   # exact (approx=False)


def _round_up(x, m):
    return -(-x // m) * m


def _vmem_capacity_bytes():
    try:
        cap = getattr(pltpu.get_tpu_info(), "vmem_capacity_bytes", None)
        if cap:
            return int(cap)
    except Exception:
        pass
    return 64 << 20   # conservative (v7x-sized) fallback


def _pick_tb(B):
    # Prefer tb=8: longer contiguous DMA runs per block, smaller resident
    # (tb, H) output, more blocks along the "parallel" batch axis.
    return 8 if B % 8 == 0 else B


def _pick_ts(S, per_row_bytes, budget_bytes):
    # Largest 8-aligned TS whose (hidden + lane-padded mask) block fits the
    # budget; S is padded up to a multiple of TS, so any S works and padding
    # waste stays < 8 rows per reduction step.
    ts_max = max(8, (budget_bytes // max(per_row_bytes, 1)) // 8 * 8)
    nk = max(1, -(-S // ts_max))          # number of reduction steps
    ts = _round_up(-(-S // nk), 8)
    return ts, nk * ts                    # (TS, padded S)


def mean_pooling(last_hidden_state, attention_masks, *, tb=None, ts=None):
    B, S, H = last_hidden_state.shape
    assert attention_masks.shape == (B, S)

    h_isz = jnp.dtype(last_hidden_state.dtype).itemsize
    m_isz = jnp.dtype(attention_masks.dtype).itemsize
    H_pad = _round_up(H, 128)             # lane padding of VMEM tiles

    vmem_cap = _vmem_capacity_bytes()
    if tb is None:
        tb = _pick_tb(B)

    # Generation-aware per-block budget: ~12.8 MiB on v7x (64 MiB VMEM),
    # 16 MiB on v5e/v6e (128 MiB VMEM).  Budget covers the hidden-state tile
    # AND the lane-padded mask tile so the mask can't silently halve TS.
    budget = min(16 << 20, vmem_cap // 5)
    per_row = tb * (H_pad * h_isz + 128 * m_isz)
    if ts is None:
        ts, S_pad = _pick_ts(S, per_row, budget)
    else:
        assert ts % 8 == 0
        S_pad = _round_up(S, ts)

    # Zero-pad S (zero mask rows contribute nothing to either sum -> exact).
    if S_pad != S:
        pad = S_pad - S
        last_hidden_state = jnp.pad(last_hidden_state, ((0, 0), (0, pad), (0, 0)))
        attention_masks = jnp.pad(attention_masks, ((0, 0), (0, pad)))

    # Put S on the sublane axis of the mask tile.
    mask3 = attention_masks.reshape(B, S_pad, 1)

    # VMEM limit: double-buffered blocks + resident output + scratch, with
    # ~25% headroom, capped at 75% of physical VMEM (~48 MiB on v7x,
    # ~96 MiB on v5e/v6e) to leave room for Mosaic internal scratch.
    h_blk = tb * ts * H_pad * h_isz
    m_blk = tb * ts * 128 * m_isz
    o_blk = max(tb, 8) * H_pad * 4
    acc_blk = 8 * 128 * 4
    need = 2 * (h_blk + m_blk + o_blk) + acc_blk
    cap = (vmem_cap * 3) // 4
    vmem_limit = int(min(max(int(need * 1.25), 16 << 20), cap))

    return pl.pallas_call(
        mean_pool_kernel,
        out_shape=jax.ShapeDtypeStruct((B, H), jnp.float32),
        grid_spec=pltpu.PrefetchScalarGridSpec(
            num_scalar_prefetch=0,
            grid=(B // tb, S_pad // ts),
            in_specs=[
                pl.BlockSpec((tb, ts, H), lambda i, k: (i, k, 0)),
                pl.BlockSpec((tb, ts, 1), lambda i, k: (i, k, 0)),
            ],
            out_specs=pl.BlockSpec((tb, H), lambda i, k: (i, 0)),
            scratch_shapes=[
                pltpu.VMEM((tb, 1), jnp.float32),   # sum_mask accumulator
            ],
        ),
        compiler_params=pltpu.CompilerParams(
            dimension_semantics=("parallel", "arbitrary"),
            vmem_limit_bytes=vmem_limit,
        ),
    )(last_hidden_state, mask3)


def mean_pooling_ref(last_hidden_state, attention_masks):
    # Pure-JAX reference mirroring the PyTorch module exactly.
    mask = attention_masks[..., None].astype(jnp.float32)
    sum_emb = jnp.sum(last_hidden_state.astype(jnp.float32) * mask, axis=1)
    sum_mask = jnp.maximum(jnp.sum(mask, axis=1), 1e-9)
    return sum_emb / sum_mask


if __name__ == "__main__":
    key = jax.random.PRNGKey(0)
    k1, k2, k3, k4, k5, k6 = jax.random.split(key, 6)

    # Case 1: small shape implied by the module (single grid step; blocks
    # cover the full batch/hidden dims, so (8,128) constraints are satisfied).
    B, S, H = 2, 8, 32
    h1 = jax.random.normal(k1, (B, S, H), dtype=jnp.float32)
    m1 = (jax.random.uniform(k2, (B, S)) > 0.3).astype(jnp.float32)
    out1 = jax.block_until_ready(mean_pooling(h1, m1))
    ref1 = mean_pooling_ref(h1, m1)
    assert out1.shape == (B, H)
    assert jnp.allclose(out1, ref1, atol=1e-5, rtol=1e-5), "case 1 mismatch"

    # Case 2: batch tiling (2 parallel blocks) + multi-step S reduction
    # (init / accumulate / finalize phases) with aligned (8,128) blocks.
    B2, S2, H2 = 16, 32, 128
    h2 = jax.random.normal(k3, (B2, S2, H2), dtype=jnp.float32)
    m2 = (jax.random.uniform(k4, (B2, S2)) > 0.3).astype(jnp.float32)
    out2 = jax.block_until_ready(mean_pooling(h2, m2, ts=8))
    ref2 = mean_pooling_ref(h2, m2)
    assert out2.shape == (B2, H2)
    assert jnp.allclose(out2, ref2, atol=1e-5, rtol=1e-5), "case 2 mismatch"

    # Case 3: bf16 hidden states + ragged S (exercises the zero-padding path
    # and the in-input-dtype multiply).
    B3, S3, H3 = 8, 20, 64
    h3 = jax.random.normal(k5, (B3, S3, H3), dtype=jnp.bfloat16)
    m3 = (jax.random.uniform(k6, (B3, S3)) > 0.3).astype(jnp.float32)
    out3 = jax.block_until_ready(mean_pooling(h3, m3, ts=8))
    ref3 = mean_pooling_ref(h3, m3)
    assert out3.shape == (B3, H3)
    assert jnp.allclose(out3, ref3, atol=1e-4, rtol=1e-4), "case 3 mismatch"

    print("KERNEL_OK")
</pallas_src>

<mosaic_0001>
module attributes {stable_mosaic.version = 11 : i64} {
  func.func @mean_pool_kernel(%arg0: i32, %arg1: i32, %arg2: memref<2x8x32xf32, #tpu.memory_space<vmem>>, %arg3: memref<2x8x1xf32, #tpu.memory_space<vmem>>, %arg4: memref<2x32xf32, #tpu.memory_space<vmem>>, %arg5: memref<2x1xf32, #tpu.memory_space<vmem>>) attributes {dimension_semantics = [#tpu.dimension_semantics<parallel>, #tpu.dimension_semantics<arbitrary>], iteration_bounds = array<i64: 1, 1>, scalar_prefetch = 0 : i64, scratch_operands = 1 : i64, tpu.core_type = #tpu.core_type<tc>, window_params = [{transform_indices = @transform_0, window_bounds = array<i64: 2, 8, 32>}, {transform_indices = @transform_1, window_bounds = array<i64: 2, 8, 1>}, {transform_indices = @transform_2, window_bounds = array<i64: 2, 32>}]} {
    %c0_i32 = arith.constant 0 : i32
    %0 = arith.cmpi eq, %arg1, %c0_i32 : i32
    %1 = arith.extui %0 : i1 to i32
    %c0_i32_0 = arith.constant 0 : i32
    %2 = arith.cmpi ne, %1, %c0_i32_0 : i32
    scf.if %2 {
      %cst_17 = arith.constant 0.000000e+00 : f32
      %18 = vector.broadcast %cst_17 : f32 to vector<2x32xf32>
      %c0_18 = arith.constant 0 : index
      %c0_19 = arith.constant 0 : index
      %19 = vector.load %arg4[%c0_18, %c0_19] : memref<2x32xf32, #tpu.memory_space<vmem>>, vector<2x32xf32>
      tpu.vector_store %arg4[%c0_18, %c0_19], %18 {strides = array<i32>} : memref<2x32xf32, #tpu.memory_space<vmem>>, vector<2x32xf32>,
      %cst_20 = arith.constant 0.000000e+00 : f32
      %20 = vector.broadcast %cst_20 : f32 to vector<2x1xf32>
      %c0_21 = arith.constant 0 : index
      %c0_22 = arith.constant 0 : index
      %21 = vector.load %arg5[%c0_21, %c0_22] : memref<2x1xf32, #tpu.memory_space<vmem>>, vector<2x1xf32>
      tpu.vector_store %arg5[%c0_21, %c0_22], %20 {strides = array<i32>} : memref<2x1xf32, #tpu.memory_space<vmem>>, vector<2x1xf32>,
    } else {
    }
    %c0 = arith.constant 0 : index
    %c0_1 = arith.constant 0 : index
    %c0_2 = arith.constant 0 : index
    %3 = vector.load %arg2[%c0, %c0_1, %c0_2] : memref<2x8x32xf32, #tpu.memory_space<vmem>>, vector<2x8x32xf32>
    %c0_3 = arith.constant 0 : index
    %c0_4 = arith.constant 0 : index
    %c0_5 = arith.constant 0 : index
    %4 = vector.load %arg3[%c0_3, %c0_4, %c0_5] : memref<2x8x1xf32, #tpu.memory_space<vmem>>, vector<2x8x1xf32>
    %5 = vector.broadcast %4 : vector<2x8x1xf32> to vector<2x8x32xf32>
    %6 = arith.mulf %3, %5 : vector<2x8x32xf32>
    %c0_6 = arith.constant 0 : index
    %c0_7 = arith.constant 0 : index
    %7 = vector.load %arg4[%c0_6, %c0_7] : memref<2x32xf32, #tpu.memory_space<vmem>>, vector<2x32xf32>
    %cst = arith.constant dense<0.000000e+00> : vector<2x32xf32>
    %8 = vector.multi_reduction <add>, %6, %cst [1] : vector<2x8x32xf32> to vector<2x32xf32>
    %9 = arith.addf %7, %8 : vector<2x32xf32>
    %c0_8 = arith.constant 0 : index
    %c0_9 = arith.constant 0 : index
    %10 = vector.load %arg4[%c0_8, %c0_9] : memref<2x32xf32, #tpu.memory_space<vmem>>, vector<2x32xf32>
    tpu.vector_store %arg4[%c0_8, %c0_9], %9 {strides = array<i32>} : memref<2x32xf32, #tpu.memory_space<vmem>>, vector<2x32xf32>,
    %c0_10 = arith.constant 0 : index
    %c0_11 = arith.constant 0 : index
    %11 = vector.load %arg5[%c0_10, %c0_11] : memref<2x1xf32, #tpu.memory_space<vmem>>, vector<2x1xf32>
    %cst_12 = arith.constant dense<0.000000e+00> : vector<2x1xf32>
    %12 = vector.multi_reduction <add>, %4, %cst_12 [1] : vector<2x8x1xf32> to vector<2x1xf32>
    %13 = arith.addf %11, %12 : vector<2x1xf32>
    %c0_13 = arith.constant 0 : index
    %c0_14 = arith.constant 0 : index
    %14 = vector.load %arg5[%c0_13, %c0_14] : memref<2x1xf32, #tpu.memory_space<vmem>>, vector<2x1xf32>
    tpu.vector_store %arg5[%c0_13, %c0_14], %13 {strides = array<i32>} : memref<2x1xf32, #tpu.memory_space<vmem>>, vector<2x1xf32>,
    %c0_i32_15 = arith.constant 0 : i32
    %15 = arith.cmpi eq, %arg1, %c0_i32_15 : i32
    %16 = arith.extui %15 : i1 to i32
    %c0_i32_16 = arith.constant 0 : i32
    %17 = arith.cmpi ne, %16, %c0_i32_16 : i32
    scf.if %17 {
      %c0_17 = arith.constant 0 : index
      %c0_18 = arith.constant 0 : index
      %18 = vector.load %arg5[%c0_17, %c0_18] : memref<2x1xf32, #tpu.memory_space<vmem>>, vector<2x1xf32>
      %cst_19 = arith.constant 9.99999971E-10 : f32
      %19 = vector.broadcast %cst_19 : f32 to vector<2x1xf32>
      %20 = arith.maximumf %18, %19 : vector<2x1xf32>
      %c0_20 = arith.constant 0 : index
      %c0_21 = arith.constant 0 : index
      %21 = vector.load %arg4[%c0_20, %c0_21] : memref<2x32xf32, #tpu.memory_space<vmem>>, vector<2x32xf32>
      %22 = tpu.reciprocal %20 : vector<2x1xf32> -> vector<2x1xf32>
      %23 = vector.broadcast %22 : vector<2x1xf32> to vector<2x32xf32>
      %24 = arith.mulf %21, %23 : vector<2x32xf32>
      %c0_22 = arith.constant 0 : index
      %c0_23 = arith.constant 0 : index
      %25 = vector.load %arg4[%c0_22, %c0_23] : memref<2x32xf32, #tpu.memory_space<vmem>>, vector<2x32xf32>
      tpu.vector_store %arg4[%c0_22, %c0_23], %24 {strides = array<i32>} : memref<2x32xf32, #tpu.memory_space<vmem>>, vector<2x32xf32>,
    } else {
    }
    return
  }
  func.func @transform_0(%arg0: i32, %arg1: i32) -> (i32, i32, i32) {
    %c0_i32 = arith.constant 0 : i32
    %c0_i32_0 = arith.constant 0 : i32
    return %arg0, %arg1, %c0_i32 : i32, i32, i32
  }
  func.func @transform_1(%arg0: i32, %arg1: i32) -> (i32, i32, i32) {
    %c0_i32 = arith.constant 0 : i32
    %c0_i32_0 = arith.constant 0 : i32
    return %arg0, %arg1, %c0_i32 : i32, i32, i32
  }
  func.func @transform_2(%arg0: i32, %arg1: i32) -> (i32, i32) {
    %c0_i32 = arith.constant 0 : i32
    %c0_i32_0 = arith.constant 0 : i32
    return %arg0, %c0_i32 : i32, i32
  }
}

</mosaic_0001>

<llo_original>
// kernel: tpu_custom_call.1
$region0: #{tpu_custom_call.1}
  #allocation0 [shape = 'u32[]', space=smem, size = 0x4, offset = 0x4, fixed_abs, tag = 'smem constant byte address 0x4 - core index']
  #allocation1 [shape = 'u32[72,128]{1,0:T(1,128)}', space=vmem, size = 0x9000, scoped, tag = 'internal scratch']
  #allocation2 [shape = 'f32[2,1]{1,0:T(2,128)}', space=vmem, size = 0x400, scoped, tag = 'scratch operand']
  %s0 = inlined_call_operand.vmem [shape: f32[2,8,32], index: 0, kind: input, shape index: {}]
  %s1 = inlined_call_operand.vmem [shape: f32[2,8,1], index: 1, kind: input, shape index: {}]
  %s2 = inlined_call_operand.hbm [shape: f32[2,32], index: 2, kind: output, shape index: {}]
  %s3 = sld [smem:[#allocation0]]
  $region26: #{tpu_custom_call.1} parent=0
    _
  %s5 = ssub.s32 1, %s3
  %s6 = scalar_select 0, %s5, %s3
  $region1: #{tpu_custom_call.1} parent=0
    #allocation3 [shape = 'u8[1024]{0}', space=vmem, size = 0x400, scoped, tag = 'output window, operand 0, single buffered']
    #allocation4 [shape = 's32[1]{0}', space=sflag, size = 0x4, scoped, tag = 'scoped memory for tpu_custom_call.1']
    %7 = vsyncpa [#allocation4], 0
    // Predicated region
    $region2: #{tpu_custom_call.1} parent=1 // pred_check
      _
    $region3: #{tpu_custom_call.1} parent=1 // pred_check_branch
      %9 = sbr.rel (0) target = $region5
    $region4: #{tpu_custom_call.1} parent=1 // pred_region
      _
    $region5: #{tpu_custom_call.1} parent=1 // pred_fallthru
      _
    // Predicated region
    $region6: #{tpu_custom_call.1} parent=1 // pred_check
      _
    $region7: #{tpu_custom_call.1} parent=1 // pred_check_branch
      %11 = sbr.rel (0) target = $region9
    $region8: #{tpu_custom_call.1} parent=1 // pred_region
      _
    $region9: #{tpu_custom_call.1} parent=1 // pred_fallthru
      _
    %p12 = scmp.eq.s32.totalorder 0, 0
    // Predicated region
    $region10: #{tpu_custom_call.1} parent=1 // pred_check
      %p13 = pneg %p12
    $region11: #{tpu_custom_call.1} parent=1 // pred_check_branch
      %15 = sbr.rel (%p13) target = $region13
    $region12: #{tpu_custom_call.1} parent=1 // pred_region
      %vm16 = vcmask 254976
      %17 = vst.msk [vmem:[#allocation3] sm:$0x3] %vm16, 0.0
      %vm18 = vcmask 1024
      %19 = vst.msk [vmem:[#allocation2] sm:$0x3] %vm18, 0.0
    $region13: #{tpu_custom_call.1} parent=1 // pred_fallthru
      _
    %v20 = vld [vmem:[%s0] sm:$0xff]
    %v21 = vld [vmem:[%s0 + $0x8] sm:$0xff]
    %v22 = vld [vmem:[%s1] sm:$0xff]
    %v23 = vld [vmem:[%s1 + $0x8] sm:$0xff]
    %25 = vset.pattern.permute.xlu0 0
    %26 = vperm.xlu0 %25, %v22
    %v27 = vpop.permute.xlu0 %26
    %30 = vset.pattern.permute.xlu0 0
    %31 = vperm.xlu0 %30, %v23
    %v32 = vpop.permute.xlu0 %31
    %v34 = vmul.f32 %v20, %v27
    %v35 = vmul.f32 %v21, %v32
    %v36 = vld [vmem:[#allocation3] sm:$0x3]
    %vm37 = vcmask 261120
    %v38 = vsel %vm37, %v34, 0.0
    %v39 = vrot.slane %v38, 4
    %v40 = vadd.f32 %v38, %v39
    %v41 = vrot.slane %v40, 2
    %v42 = vadd.f32 %v40, %v41
    %v43 = vrot.slane %v42, 1
    %v44 = vadd.f32 %v42, %v43
    %v45 = vsel %vm37, %v35, 0.0
    %v46 = vrot.slane %v45, 4
    %v47 = vadd.f32 %v45, %v46
    %v48 = vrot.slane %v47, 2
    %v49 = vadd.f32 %v47, %v48
    %v50 = vrot.slane %v49, 1
    %v51 = vadd.f32 %v49, %v50
    %vm54 = vcmask 1041409
    %v55 = vsel %vm54, %v51, %v44
    %v57 = vadd.f32 %v36, %v55
    %vm58 = vcmask 254976
    %59 = vst.msk [vmem:[#allocation3] sm:$0x3] %vm58, %v57
    %v60 = vld [vmem:[#allocation2] sm:$0x3]
    %vm61 = vcmask 7168
    %v62 = vsel %vm61, %v22, 0.0
    %v63 = vrot.slane %v62, 4
    %v64 = vadd.f32 %v62, %v63
    %v65 = vrot.slane %v64, 2
    %v66 = vadd.f32 %v64, %v65
    %v67 = vrot.slane %v66, 1
    %v68 = vadd.f32 %v66, %v67
    %v69 = vsel %vm61, %v23, 0.0
    %v70 = vrot.slane %v69, 4
    %v71 = vadd.f32 %v69, %v70
    %v72 = vrot.slane %v71, 2
    %v73 = vadd.f32 %v71, %v72
    %v74 = vrot.slane %v73, 1
    %v75 = vadd.f32 %v73, %v74
    %v78 = vsel %vm54, %v75, %v68
    %v80 = vadd.f32 %v60, %v78
    %vm81 = vcmask 1024
    %82 = vst.msk [vmem:[#allocation2] sm:$0x3] %vm81, %v80
    // Predicated region
    $region14: #{tpu_custom_call.1} parent=1 // pred_check
      %p83 = pneg %p12
    $region15: #{tpu_custom_call.1} parent=1 // pred_check_branch
      %85 = sbr.rel (%p83) target = $region17
    $region16: #{tpu_custom_call.1} parent=1 // pred_region
      %v86 = vld [vmem:[#allocation2] sm:$0x3]
      %v87 = vmax.f32 %v86, 1e-09
      %v88 = vld [vmem:[#allocation3] sm:$0x3]
      %v89 = vrcp.pop %v87
      %v90 = vmul.f32 %v87, %v89
      %v91 = vsub.f32 1.0, %v90
      %v92 = vmul.f32 %v89, %v91
      %v93 = vadd.f32 %v89, %v92
      %vm94 = vweird.f32 %v87
      %vm95 = vweird.f32 %v89
      %vm96 = vmor %vm94, %vm95
      %v97 = vsel %vm96, %v89, %v93
      %v98 = vand.u32 2147483647, %v87
      %vm99 = vcmp.eq.f32.partialorder %v98, 8.507059e+37
      %v100 = vand.u32 %v87, 2147483648
      %v101 = vor.u32 1.1754944e-38, %v100
      %v102 = vsel %vm99, %v101, %v97
      %104 = vset.pattern.permute.xlu0 0
      %105 = vperm.xlu0 %104, %v102
      %v106 = vpop.permute.xlu0 %105
      %v108 = vmul.f32 %v88, %v106
      %109 = vst.msk [vmem:[#allocation3] sm:$0x3] %vm58, %v108
    $region17: #{tpu_custom_call.1} parent=1 // pred_fallthru
      _
    // Predicated region
    $region18: #{tpu_custom_call.1} parent=1 // pred_check
      _
    $region19: #{tpu_custom_call.1} parent=1 // pred_check_branch
      %111 = sbr.rel (0) target = $region21
    $region20: #{tpu_custom_call.1} parent=1 // pred_region
      %113 = vsyncadd [#allocation4], 0
      %s115 = sshll.u32 [#allocation3], 4
      %s116 = int_to_ptr.vmem [resolvable:$true] %s115
      %s117 = sshll.u32 %s2, 4
      %s118 = int_to_ptr.hbm [resolvable:$true] %s117
      %120 = dma.vmem_to_hbm [thread:$0]  %s116, 32, %s118, [#allocation4]
    $region21: #{tpu_custom_call.1} parent=1 // pred_fallthru
      _
    // Predicated region
    $region22: #{tpu_custom_call.1} parent=1 // pred_check
      _
    $region23: #{tpu_custom_call.1} parent=1 // pred_check_branch
      %122 = sbr.rel (0) target = $region25
    $region24: #{tpu_custom_call.1} parent=1 // pred_region
      %124 = dma.done [#allocation4], 32
    $region25: #{tpu_custom_call.1} parent=1 // pred_fallthru
      _
    %125 = vsyncpa [#allocation4], 1

</llo_original>
